<compile_context>
chip_gen: v7x
topology: tpu7x:2x2x1
jax: 0.10.0
libtpu: 0.0.40
codegen_flags: <defaults>
</compile_context>

<pallas_src>
import jax
import jax.numpy as jnp
from jax.experimental import pallas as pl
from jax.experimental.pallas import tpu as pltpu


def _attention_kernel(hid_ref, enc_ref, wh_ref, we_ref, b_ref, v_ref, ctx_ref):
    # hid_ref: (1, TB, H)   enc_ref: (TB, S, E)
    # wh_ref : (H, H)       we_ref : (E, H)
    # b_ref  : (1, H)       v_ref  : (1, H)
    # ctx_ref: (1, TB, E)
    TB, S, E = enc_ref.shape
    H = wh_ref.shape[1]

    hid = hid_ref[0]                                   # (TB, H)
    enc = enc_ref[...]                                 # (TB, S, E)

    # hidden projection with the bias folded in, once per batch element
    eh_b = (jnp.dot(hid, wh_ref[...], preferred_element_type=jnp.float32)
            + b_ref[...])[:, None, :]                  # (TB, 1, H)

    # encoder projection: single flattened matmul on the MXU
    ee = jnp.dot(enc.reshape(TB * S, E), we_ref[...],
                 preferred_element_type=jnp.float32)   # (TB*S, H)
    energies = jnp.tanh(ee.reshape(TB, S, H) + eh_b)   # (TB, S, H)

    # scores = energies @ v^T  -> (TB, S)
    scores = jnp.sum(energies * v_ref[...], axis=-1)

    # softmax over the sequence axis (torch dim=1)
    m = jnp.max(scores, axis=-1, keepdims=True)
    p = jnp.exp(scores - m)
    w = p * pl.reciprocal(jnp.sum(p, axis=-1, keepdims=True), approx=True)

    # context = weights^T @ enc, batched on the MXU -> (TB, 1, E)
    ctx = jnp.einsum('bqs,bse->bqe', w[:, None, :], enc,
                     preferred_element_type=jnp.float32)
    ctx_ref[0] = ctx[:, 0, :].astype(ctx_ref.dtype)    # dense (TB, E) slab


def _pick_tb(B, max_tb=8):
    """Largest divisor of B (<= max_tb) that still leaves >= 2 grid steps
    (keeps the grid shardable across v7x's two TensorCores)."""
    best = 1
    for tb in range(2, min(B, max_tb) + 1):
        if B % tb == 0 and B // tb >= 2:
            best = tb
    return best


def attention_forward(hidden, encoder_outputs, attn_w, attn_b, v_w, tb=None):
    """hidden: (B, H); encoder_outputs: (B, S, 2H);
       attn_w: (H, 3H); attn_b: (H,); v_w: (1, H) -> context (B, 1, 2H)"""
    B, H = hidden.shape
    _, S, E = encoder_outputs.shape  # E == 2H
    assert attn_w.shape == (H, 3 * H)

    TB = _pick_tb(B) if tb is None else tb
    assert B % TB == 0
    G = B // TB

    # split & pre-transpose the concat-Linear weight
    wh_t = attn_w[:, :H].T            # (H, H)
    we_t = attn_w[:, H:].T            # (2H, H)
    b2 = attn_b.reshape(1, H)
    v2 = v_w.reshape(1, H)
    hid3 = hidden.reshape(G, TB, H)

    out = pl.pallas_call(
        _attention_kernel,
        out_shape=jax.ShapeDtypeStruct((G, TB, E), encoder_outputs.dtype),
        grid_spec=pltpu.PrefetchScalarGridSpec(
            num_scalar_prefetch=0,
            grid=(G,),
            in_specs=[
                pl.BlockSpec((1, TB, H), lambda g: (g, 0, 0)),
                pl.BlockSpec((TB, S, E), lambda g: (g, 0, 0)),
                pl.BlockSpec((H, H), lambda g: (0, 0)),
                pl.BlockSpec((E, H), lambda g: (0, 0)),
                pl.BlockSpec((1, H), lambda g: (0, 0)),
                pl.BlockSpec((1, H), lambda g: (0, 0)),
            ],
            out_specs=pl.BlockSpec((1, TB, E), lambda g: (g, 0, 0)),
        ),
        compiler_params=pltpu.CompilerParams(
            dimension_semantics=("parallel",)),
    )(hid3, encoder_outputs, wh_t, we_t, b2, v2)
    return out.reshape(B, 1, E)


def attention_reference(hidden, encoder_outputs, attn_w, attn_b, v_w):
    B, H = hidden.shape
    S = encoder_outputs.shape[1]
    hid_exp = jnp.repeat(hidden[:, None, :], S, axis=1)           # (B,S,H)
    attn_in = jnp.concatenate([hid_exp, encoder_outputs], axis=2) # (B,S,3H)
    energies = jnp.tanh(attn_in @ attn_w.T + attn_b)              # (B,S,H)
    scores = energies @ v_w.T                                     # (B,S,1)
    weights = jax.nn.softmax(scores, axis=1)
    return jnp.einsum('bsa,bse->bae', weights, encoder_outputs)   # (B,1,2H)


if __name__ == "__main__":
    B, S, H = 8, 8, 32
    key = jax.random.PRNGKey(0)
    k1, k2, k3, k4, k5 = jax.random.split(key, 5)

    hidden = jax.random.normal(k1, (B, H), dtype=jnp.float32)
    encoder_outputs = jax.random.normal(k2, (B, S, 2 * H), dtype=jnp.float32)

    # deterministic parameter init (matching PyTorch Linear shapes)
    bound_attn = 1.0 / jnp.sqrt(3.0 * H)
    attn_w = jax.random.uniform(k3, (H, 3 * H), minval=-bound_attn,
                                maxval=bound_attn, dtype=jnp.float32)
    attn_b = jax.random.uniform(k4, (H,), minval=-bound_attn,
                                maxval=bound_attn, dtype=jnp.float32)
    bound_v = 1.0 / jnp.sqrt(float(H))
    v_w = jax.random.uniform(k5, (1, H), minval=-bound_v,
                             maxval=bound_v, dtype=jnp.float32)

    ctx = attention_forward(hidden, encoder_outputs, attn_w, attn_b, v_w)
    ctx = jax.block_until_ready(ctx)

    ref = attention_reference(hidden, encoder_outputs, attn_w, attn_b, v_w)
    assert ctx.shape == (B, 1, 2 * H)
    # tolerance loosened because of pl.reciprocal(approx=True) in the softmax
    assert jnp.allclose(ctx, ref, atol=5e-3, rtol=5e-3)
    print("KERNEL_OK")
</pallas_src>

<mosaic_0001>
module attributes {stable_mosaic.version = 11 : i64} {
  func.func @_attention_kernel(%arg0: i32, %arg1: memref<1x4x32xf32, #tpu.memory_space<vmem>>, %arg2: memref<4x8x64xf32, #tpu.memory_space<vmem>>, %arg3: memref<32x32xf32, #tpu.memory_space<vmem>>, %arg4: memref<64x32xf32, #tpu.memory_space<vmem>>, %arg5: memref<1x32xf32, #tpu.memory_space<vmem>>, %arg6: memref<1x32xf32, #tpu.memory_space<vmem>>, %arg7: memref<1x4x64xf32, #tpu.memory_space<vmem>>) attributes {dimension_semantics = [#tpu.dimension_semantics<parallel>], iteration_bounds = array<i64: 2>, scalar_prefetch = 0 : i64, scratch_operands = 0 : i64, tpu.core_type = #tpu.core_type<tc>, window_params = [{transform_indices = @transform_0, window_bounds = array<i64: 1, 4, 32>}, {transform_indices = @transform_1, window_bounds = array<i64: 4, 8, 64>}, {pipeline_mode = #tpu.pipeline_mode<synchronous>, transform_indices = @transform_2, window_bounds = array<i64: 32, 32>}, {pipeline_mode = #tpu.pipeline_mode<synchronous>, transform_indices = @transform_3, window_bounds = array<i64: 64, 32>}, {pipeline_mode = #tpu.pipeline_mode<synchronous>, transform_indices = @transform_4, window_bounds = array<i64: 1, 32>}, {pipeline_mode = #tpu.pipeline_mode<synchronous>, transform_indices = @transform_5, window_bounds = array<i64: 1, 32>}, {transform_indices = @transform_6, window_bounds = array<i64: 1, 4, 64>}]} {
    %c0 = arith.constant 0 : index
    %c0_0 = arith.constant 0 : index
    %c0_1 = arith.constant 0 : index
    %0 = vector.load %arg1[%c0, %c0_0, %c0_1] : memref<1x4x32xf32, #tpu.memory_space<vmem>>, vector<1x4x32xf32>
    %1 = vector.shape_cast %0 : vector<1x4x32xf32> to vector<4x32xf32>
    %c0_2 = arith.constant 0 : index
    %c0_3 = arith.constant 0 : index
    %c0_4 = arith.constant 0 : index
    %2 = vector.load %arg2[%c0_2, %c0_3, %c0_4] : memref<4x8x64xf32, #tpu.memory_space<vmem>>, vector<4x8x64xf32>
    %c0_5 = arith.constant 0 : index
    %c0_6 = arith.constant 0 : index
    %3 = vector.load %arg3[%c0_5, %c0_6] : memref<32x32xf32, #tpu.memory_space<vmem>>, vector<32x32xf32>
    %cst = arith.constant dense<0.000000e+00> : vector<4x32xf32>
    %4 = tpu.matmul %1, %3, %cst {dimension_numbers = #tpu.dot_dimension_numbers<[1], [0], [0], [1], [0, 0, 1, 1], [], []>} : vector<4x32xf32>, vector<32x32xf32>, vector<4x32xf32> -> vector<4x32xf32>
    %c0_7 = arith.constant 0 : index
    %c0_8 = arith.constant 0 : index
    %5 = vector.load %arg5[%c0_7, %c0_8] : memref<1x32xf32, #tpu.memory_space<vmem>>, vector<1x32xf32>
    %6 = vector.broadcast %5 : vector<1x32xf32> to vector<4x32xf32>
    %7 = arith.addf %4, %6 : vector<4x32xf32>
    %8 = vector.shape_cast %7 : vector<4x32xf32> to vector<4x1x32xf32>
    %9 = vector.shape_cast %2 : vector<4x8x64xf32> to vector<32x64xf32>
    %c0_9 = arith.constant 0 : index
    %c0_10 = arith.constant 0 : index
    %10 = vector.load %arg4[%c0_9, %c0_10] : memref<64x32xf32, #tpu.memory_space<vmem>>, vector<64x32xf32>
    %cst_11 = arith.constant dense<0.000000e+00> : vector<32x32xf32>
    %11 = tpu.matmul %9, %10, %cst_11 {dimension_numbers = #tpu.dot_dimension_numbers<[1], [0], [0], [1], [0, 0, 1, 1], [], []>} : vector<32x64xf32>, vector<64x32xf32>, vector<32x32xf32> -> vector<32x32xf32>
    %12 = vector.shape_cast %11 : vector<32x32xf32> to vector<4x8x32xf32>
    %13 = vector.broadcast %8 : vector<4x1x32xf32> to vector<4x8x32xf32>
    %14 = arith.addf %12, %13 : vector<4x8x32xf32>
    %15 = math.tanh %14 : vector<4x8x32xf32>
    %c0_12 = arith.constant 0 : index
    %c0_13 = arith.constant 0 : index
    %16 = vector.load %arg6[%c0_12, %c0_13] : memref<1x32xf32, #tpu.memory_space<vmem>>, vector<1x32xf32>
    %17 = vector.shape_cast %16 : vector<1x32xf32> to vector<1x1x32xf32>
    %18 = vector.broadcast %17 : vector<1x1x32xf32> to vector<4x8x32xf32>
    %19 = arith.mulf %15, %18 : vector<4x8x32xf32>
    %cst_14 = arith.constant dense<0.000000e+00> : vector<4x8xf32>
    %20 = vector.multi_reduction <add>, %19, %cst_14 [2] : vector<4x8x32xf32> to vector<4x8xf32>
    %cst_15 = arith.constant dense<0xFF800000> : vector<4xf32>
    %21 = vector.multi_reduction <maximumf>, %20, %cst_15 [1] : vector<4x8xf32> to vector<4xf32>
    %22 = vector.shape_cast %21 : vector<4xf32> to vector<4x1xf32>
    %23 = vector.broadcast %22 : vector<4x1xf32> to vector<4x8xf32>
    %24 = arith.subf %20, %23 : vector<4x8xf32>
    %25 = math.exp %24 : vector<4x8xf32>
    %cst_16 = arith.constant dense<0.000000e+00> : vector<4xf32>
    %26 = vector.multi_reduction <add>, %25, %cst_16 [1] : vector<4x8xf32> to vector<4xf32>
    %27 = vector.shape_cast %26 : vector<4xf32> to vector<4x1xf32>
    %28 = tpu.reciprocal %27 {approx = true} : vector<4x1xf32> -> vector<4x1xf32>
    %29 = vector.broadcast %28 : vector<4x1xf32> to vector<4x8xf32>
    %30 = arith.mulf %25, %29 : vector<4x8xf32>
    %31 = vector.shape_cast %30 : vector<4x8xf32> to vector<4x1x8xf32>
    "tpu.trace_start"() <{level = 10 : i32, message = "bqs,bse->bqe"}> : () -> ()
    %cst_17 = arith.constant dense<0.000000e+00> : vector<4x1x64xf32>
    %32 = tpu.matmul %31, %2, %cst_17 {dimension_numbers = #tpu.dot_dimension_numbers<[2], [1], [1], [2], [0, 0, 0, 1, 1, 2], [0], [0]>} : vector<4x1x8xf32>, vector<4x8x64xf32>, vector<4x1x64xf32> -> vector<4x1x64xf32>
    "tpu.trace_stop"() : () -> ()
    %33 = vector.shape_cast %32 : vector<4x1x64xf32> to vector<4x64xf32>
    %c0_18 = arith.constant 0 : index
    %c0_19 = arith.constant 0 : index
    %c0_20 = arith.constant 0 : index
    %34 = vector.load %arg7[%c0_18, %c0_19, %c0_20] : memref<1x4x64xf32, #tpu.memory_space<vmem>>, vector<1x4x64xf32>
    %35 = vector.shape_cast %34 : vector<1x4x64xf32> to vector<4x64xf32>
    %36 = vector.shape_cast %33 : vector<4x64xf32> to vector<1x4x64xf32>
    tpu.vector_store %arg7[%c0_18, %c0_19, %c0_20], %36 {strides = array<i32>} : memref<1x4x64xf32, #tpu.memory_space<vmem>>, vector<1x4x64xf32>,
    return
  }
  func.func @transform_0(%arg0: i32) -> (i32, i32, i32) {
    %c0_i32 = arith.constant 0 : i32
    %c0_i32_0 = arith.constant 0 : i32
    %c0_i32_1 = arith.constant 0 : i32
    return %arg0, %c0_i32, %c0_i32_0 : i32, i32, i32
  }
  func.func @transform_1(%arg0: i32) -> (i32, i32, i32) {
    %c0_i32 = arith.constant 0 : i32
    %c0_i32_0 = arith.constant 0 : i32
    %c0_i32_1 = arith.constant 0 : i32
    return %arg0, %c0_i32, %c0_i32_0 : i32, i32, i32
  }
  func.func @transform_2(%arg0: i32) -> (i32, i32) {
    %c0_i32 = arith.constant 0 : i32
    %c0_i32_0 = arith.constant 0 : i32
    %c0_i32_1 = arith.constant 0 : i32
    return %c0_i32, %c0_i32_0 : i32, i32
  }
  func.func @transform_3(%arg0: i32) -> (i32, i32) {
    %c0_i32 = arith.constant 0 : i32
    %c0_i32_0 = arith.constant 0 : i32
    %c0_i32_1 = arith.constant 0 : i32
    return %c0_i32, %c0_i32_0 : i32, i32
  }
  func.func @transform_4(%arg0: i32) -> (i32, i32) {
    %c0_i32 = arith.constant 0 : i32
    %c0_i32_0 = arith.constant 0 : i32
    %c0_i32_1 = arith.constant 0 : i32
    return %c0_i32, %c0_i32_0 : i32, i32
  }
  func.func @transform_5(%arg0: i32) -> (i32, i32) {
    %c0_i32 = arith.constant 0 : i32
    %c0_i32_0 = arith.constant 0 : i32
    %c0_i32_1 = arith.constant 0 : i32
    return %c0_i32, %c0_i32_0 : i32, i32
  }
  func.func @transform_6(%arg0: i32) -> (i32, i32, i32) {
    %c0_i32 = arith.constant 0 : i32
    %c0_i32_0 = arith.constant 0 : i32
    %c0_i32_1 = arith.constant 0 : i32
    return %arg0, %c0_i32, %c0_i32_0 : i32, i32, i32
  }
}

</mosaic_0001>

<llo_original>
// kernel: tpu_custom_call.1
$region0: #{tpu_custom_call.1}
  #allocation0 [shape = 'u32[]', space=smem, size = 0x4, offset = 0x4, fixed_abs, tag = 'smem constant byte address 0x4 - core index']
  #allocation1 [shape = 'u32[144,128]{1,0:T(1,128)}', space=vmem, size = 0x12000, scoped, tag = 'internal scratch']
  %s0 = inlined_call_operand.hbm [shape: f32[2,4,32], index: 0, kind: input, shape index: {}]
  %s1 = inlined_call_operand.vmem [shape: f32[8,8,64], index: 1, kind: input, shape index: {}]
  %s2 = inlined_call_operand.vmem [shape: f32[32,32], index: 2, kind: input, shape index: {}]
  %s3 = inlined_call_operand.vmem [shape: f32[64,32], index: 3, kind: input, shape index: {}]
  %s4 = inlined_call_operand.vmem [shape: f32[1,32], index: 4, kind: input, shape index: {}]
  %s5 = inlined_call_operand.vmem [shape: f32[1,32], index: 5, kind: input, shape index: {}]
  %s6 = inlined_call_operand.hbm [shape: f32[2,4,64], index: 6, kind: output, shape index: {}]
  %s7 = sld [smem:[#allocation0]]
  $region61: #{tpu_custom_call.1} parent=0
    _
  %s9 = ssub.s32 1, %s7
  %s10 = scalar_select 0, %s9, %s7
  $region1: #{tpu_custom_call.1} parent=0
    #allocation2 [shape = 'u8[4096]{0}', space=vmem, size = 0x1000, scoped, tag = 'input window, operand 0']
    #allocation3 [shape = 's32[2]{0}', space=sflag, size = 0x8, scoped, tag = 'scoped memory for tpu_custom_call.1']
    #allocation4 [shape = 's32[2]{0}', space=sflag, size = 0x8, scoped, tag = 'scoped memory for tpu_custom_call.1']
    #allocation5 [shape = 'u8[4096]{0}', space=vmem, size = 0x1000, scoped, tag = 'output window, operand 0']
    %11 = vsyncpa [#allocation3], 0
    %s12 = scalar_lea.sflag [#allocation3], 1
    %13 = vsyncpa %s12, 0
    %14 = vsyncpa [#allocation4], 0
    %s15 = scalar_lea.sflag [#allocation4], 1
    %16 = vsyncpa %s15, 0
    loop: start=0, step=1, limit=4
    $region2: #{tpu_custom_call.1} parent=1 // loop_pre_header
      _
    $region3: #{tpu_custom_call.1} parent=1 // loop_header
      %s18 = sphi 0, %s22
      %p19 = scmp.ge.s32.totalorder %s18, 4
      %s28 = sphi 0, %s30
      %s31 = sphi 0, %s28
      %s32 = sphi 0, %s31
      %s48 = sphi 0, %s32
      %s54 = sphi 0, %s56
      %s57 = sphi 0, %s54
      %s58 = sphi 0, %s57
      %s74 = sphi 0, %s58
      %s78 = sphi 0, %s78
      %s80 = sphi 0, %s78
      %s81 = sphi 0, %s80
      %s95 = sphi 0, %s81
      %s99 = sphi 0, %s99
      %s101 = sphi 0, %s99
      %s102 = sphi 0, %s101
      %s116 = sphi 0, %s102
      %s120 = sphi 0, %s120
      %s122 = sphi 0, %s120
      %s123 = sphi 0, %s122
      %s137 = sphi 0, %s123
      %s141 = sphi 0, %s141
      %s143 = sphi 0, %s141
      %s144 = sphi 0, %s143
      %s158 = sphi 0, %s144
      %s164 = sphi 0, %s166
      %s167 = sphi 0, %s164
      %s168 = sphi 0, %s167
      %s184 = sphi 0, %s168
    $region4: #{tpu_custom_call.1} parent=1 // loop_header_branch
      %21 = sbr.rel (%p19) target = $region8
    $region5: #{tpu_custom_call.1} parent=1 // loop_body
      %s23 = ssub.s32 %s18, 1
      %s24 = ssub.s32 %s18, 2
      %s25 = sadd.s32 %s18, 1
      %s26 = ssub.s32 %s18, %s25
      %p27 = scmp.eq.s32.totalorder %s26, 0
      %s29 = sadd.s32 %s28, 1
      %s30 = scalar_select %p27, %s28, %s29
      %p33 = pneg %p27
      %p34 = scmp.eq.s32.totalorder %s18, 1
      %p35 = por %p33, %p34
      %p36 = scmp.ne.s32.totalorder %s28, %s31
      %p37 = scmp.eq.s32.totalorder %s18, 0
      %p38 = por %p36, %p37
      %p39 = scmp.ne.s32.totalorder %s28, %s31
      %p40 = scmp.eq.s32.totalorder %s23, 1
      %p41 = por %p39, %p40
      %p42 = scmp.ne.s32.totalorder %s31, %s32
      %p43 = scmp.eq.s32.totalorder %s23, 0
      %p44 = por %p42, %p43
      %p45 = scmp.ne.s32.totalorder %s31, %s32
      %p46 = scmp.eq.s32.totalorder %s24, 1
      %p47 = por %p45, %p46
      %p49 = scmp.ne.s32.totalorder %s32, %s48
      %p50 = scmp.eq.s32.totalorder %s24, 0
      %p51 = por %p49, %p50
      %s52 = ssub.s32 %s18, %s25
      %p53 = scmp.eq.s32.totalorder %s52, 0
      %s55 = sadd.s32 %s54, 1
      %s56 = scalar_select %p53, %s54, %s55
      %p59 = pneg %p53
      %p60 = scmp.eq.s32.totalorder %s18, 1
      %p61 = por %p59, %p60
      %p62 = scmp.ne.s32.totalorder %s54, %s57
      %p63 = scmp.eq.s32.totalorder %s18, 0
      %p64 = por %p62, %p63
      %p65 = scmp.ne.s32.totalorder %s54, %s57
      %p66 = scmp.eq.s32.totalorder %s23, 1
      %p67 = por %p65, %p66
      %p68 = scmp.ne.s32.totalorder %s57, %s58
      %p69 = scmp.eq.s32.totalorder %s23, 0
      %p70 = por %p68, %p69
      %p71 = scmp.ne.s32.totalorder %s57, %s58
      %p72 = scmp.eq.s32.totalorder %s24, 1
      %p73 = por %p71, %p72
      %p75 = scmp.ne.s32.totalorder %s58, %s74
      %p76 = scmp.eq.s32.totalorder %s24, 0
      %p77 = por %p75, %p76
      %s79 = sadd.s32 %s78, 1
      %p82 = scmp.eq.s32.totalorder %s18, 1
      %p83 = scmp.ne.s32.totalorder %s78, %s80
      %p84 = scmp.eq.s32.totalorder %s18, 0
      %p85 = por %p83, %p84
      %p86 = scmp.ne.s32.totalorder %s78, %s80
      %p87 = scmp.eq.s32.totalorder %s23, 1
      %p88 = por %p86, %p87
      %p89 = scmp.ne.s32.totalorder %s80, %s81
      %p90 = scmp.eq.s32.totalorder %s23, 0
      %p91 = por %p89, %p90
      %p92 = scmp.ne.s32.totalorder %s80, %s81
      %p93 = scmp.eq.s32.totalorder %s24, 1
      %p94 = por %p92, %p93
      %p96 = scmp.ne.s32.totalorder %s81, %s95
      %p97 = scmp.eq.s32.totalorder %s24, 0
      %p98 = por %p96, %p97
      %s100 = sadd.s32 %s99, 1
      %p103 = scmp.eq.s32.totalorder %s18, 1
      %p104 = scmp.ne.s32.totalorder %s99, %s101
      %p105 = scmp.eq.s32.totalorder %s18, 0
      %p106 = por %p104, %p105
      %p107 = scmp.ne.s32.totalorder %s99, %s101
      %p108 = scmp.eq.s32.totalorder %s23, 1
      %p109 = por %p107, %p108
      %p110 = scmp.ne.s32.totalorder %s101, %s102
      %p111 = scmp.eq.s32.totalorder %s23, 0
      %p112 = por %p110, %p111
      %p113 = scmp.ne.s32.totalorder %s101, %s102
      %p114 = scmp.eq.s32.totalorder %s24, 1
      %p115 = por %p113, %p114
      %p117 = scmp.ne.s32.totalorder %s102, %s116
      %p118 = scmp.eq.s32.totalorder %s24, 0
      %p119 = por %p117, %p118
      %s121 = sadd.s32 %s120, 1
      %p124 = scmp.eq.s32.totalorder %s18, 1
      %p125 = scmp.ne.s32.totalorder %s120, %s122
      %p126 = scmp.eq.s32.totalorder %s18, 0
      %p127 = por %p125, %p126
      %p128 = scmp.ne.s32.totalorder %s120, %s122
      %p129 = scmp.eq.s32.totalorder %s23, 1
      %p130 = por %p128, %p129
      %p131 = scmp.ne.s32.totalorder %s122, %s123
      %p132 = scmp.eq.s32.totalorder %s23, 0
      %p133 = por %p131, %p132
      %p134 = scmp.ne.s32.totalorder %s122, %s123
      %p135 = scmp.eq.s32.totalorder %s24, 1
      %p136 = por %p134, %p135
      %p138 = scmp.ne.s32.totalorder %s123, %s137
      %p139 = scmp.eq.s32.totalorder %s24, 0
      %p140 = por %p138, %p139
      %s142 = sadd.s32 %s141, 1
      %p145 = scmp.eq.s32.totalorder %s18, 1
      %p146 = scmp.ne.s32.totalorder %s141, %s143
      %p147 = scmp.eq.s32.totalorder %s18, 0
      %p148 = por %p146, %p147
      %p149 = scmp.ne.s32.totalorder %s141, %s143
      %p150 = scmp.eq.s32.totalorder %s23, 1
      %p151 = por %p149, %p150
      %p152 = scmp.ne.s32.totalorder %s143, %s144
      %p153 = scmp.eq.s32.totalorder %s23, 0
      %p154 = por %p152, %p153
      %p155 = scmp.ne.s32.totalorder %s143, %s144
      %p156 = scmp.eq.s32.totalorder %s24, 1
      %p157 = por %p155, %p156
      %p159 = scmp.ne.s32.totalorder %s144, %s158
      %p160 = scmp.eq.s32.totalorder %s24, 0
      %p161 = por %p159, %p160
      %s162 = ssub.s32 %s18, %s25
      %p163 = scmp.eq.s32.totalorder %s162, 0
      %s165 = sadd.s32 %s164, 1
      %s166 = scalar_select %p163, %s164, %s165
      %p169 = pneg %p163
      %p170 = scmp.eq.s32.totalorder %s18, 1
      %p171 = por %p169, %p170
      %p172 = scmp.ne.s32.totalorder %s164, %s167
      %p173 = scmp.eq.s32.totalorder %s18, 0
      %p174 = por %p172, %p173
      %p175 = scmp.ne.s32.totalorder %s164, %s167
      %p176 = scmp.eq.s32.totalorder %s23, 1
      %p177 = por %p175, %p176
      %p178 = scmp.ne.s32.totalorder %s167, %s168
      %p179 = scmp.eq.s32.totalorder %s23, 0
      %p180 = por %p178, %p179
      %p181 = scmp.ne.s32.totalorder %s167, %s168
      %p182 = scmp.eq.s32.totalorder %s24, 1
      %p183 = por %p181, %p182
      %p185 = scmp.ne.s32.totalorder %s168, %s184
      %p186 = scmp.eq.s32.totalorder %s24, 0
      %p187 = por %p185, %p186
      %p188 = scmp.le.s32.totalorder 1, %s18
      %p189 = scmp.lt.s32.totalorder %s18, 3
      %p190 = pnand %p188, %p189
      %p191 = pneg %p190
      // Predicated region
      $region9: #{tpu_custom_call.1} parent=5 // pred_check
        _
      $region10: #{tpu_custom_call.1} parent=5 // pred_check_branch
        %193 = sbr.rel (%p190) target = $region12
      $region11: #{tpu_custom_call.1} parent=5 // pred_region
        %s194 = ssub.s32 %s18, 1
        // Predicated region
        $region13: #{tpu_custom_call.1} parent=11 // pred_check
          %p195 = pneg %p91
        $region14: #{tpu_custom_call.1} parent=11 // pred_check_branch
          %197 = sbr.rel (%p195) target = $region16
        $region15: #{tpu_custom_call.1} parent=11 // pred_region
          _
        $region16: #{tpu_custom_call.1} parent=11 // pred_fallthru
          _
        // Predicated region
        $region17: #{tpu_custom_call.1} parent=11 // pred_check
          %p198 = pneg %p112
        $region18: #{tpu_custom_call.1} parent=11 // pred_check_branch
          %200 = sbr.rel (%p198) target = $region20
        $region19: #{tpu_custom_call.1} parent=11 // pred_region
          _
        $region20: #{tpu_custom_call.1} parent=11 // pred_fallthru
          _
        // Predicated region
        $region21: #{tpu_custom_call.1} parent=11 // pred_check
          %p201 = pneg %p133
        $region22: #{tpu_custom_call.1} parent=11 // pred_check_branch
          %203 = sbr.rel (%p201) target = $region24
        $region23: #{tpu_custom_call.1} parent=11 // pred_region
          _
        $region24: #{tpu_custom_call.1} parent=11 // pred_fallthru
          _
        // Predicated region
        $region25: #{tpu_custom_call.1} parent=11 // pred_check
          %p204 = pneg %p154
        $region26: #{tpu_custom_call.1} parent=11 // pred_check_branch
          %206 = sbr.rel (%p204) target = $region28
        $region27: #{tpu_custom_call.1} parent=11 // pred_region
          _
        $region28: #{tpu_custom_call.1} parent=11 // pred_fallthru
          _
      $region12: #{tpu_custom_call.1} parent=5 // pred_fallthru
        _
      %p207 = scmp.lt.s32.totalorder %s18, 2
      // Predicated region
      $region29: #{tpu_custom_call.1} parent=5 // pred_check
        %p208 = pneg %p207
      $region30: #{tpu_custom_call.1} parent=5 // pred_check_branch
        %210 = sbr.rel (%p208) target = $region32
      $region31: #{tpu_custom_call.1} parent=5 // pred_region
        // Predicated region
        $region33: #{tpu_custom_call.1} parent=31 // pred_check
          %p211 = pneg %p38
        $region34: #{tpu_custom_call.1} parent=31 // pred_check_branch
          %213 = sbr.rel (%p211) target = $region36
        $region35: #{tpu_custom_call.1} parent=31 // pred_region
          %s214 = sand.u32 %s28, 1
          %s215 = scalar_lea.sflag [#allocation3], %s214
          %s216 = sand.u32 %s28, 1
          %s217 = smul.addr %s216, 4
          %s218 = scalar_lea.vmem [#allocation2], %s217
          %s220 = ssub.s32 64, 64
          %221 = vsyncadd %s215, %s220
          %s222 = smul.addr %s18, 64
          %s223 = scalar_lea.hbm %s0, %s222
          %s225 = sshll.u32 %s218, 4
          %s226 = int_to_ptr.vmem [resolvable:$true] %s225
          %228 = dma.hbm_to_vmem [thread:$0]  %s223, 64, %s226, %s215
        $region36: #{tpu_custom_call.1} parent=31 // pred_fallthru
          _
        // Predicated region
        $region37: #{tpu_custom_call.1} parent=31 // pred_check
          %p229 = pneg %p64
        $region38: #{tpu_custom_call.1} parent=31 // pred_check_branch
          %231 = sbr.rel (%p229) target = $region40
        $region39: #{tpu_custom_call.1} parent=31 // pred_region
          %s232 = smul.u32 4, %s18
          %p233 = scmp.lt.s32.totalorder %s232, 7
          %s234 = scalar_select %p233, %s232, 7
          %s235 = smul.addr %s234, 8
          %s236 = scalar_lea.vmem %s1, %s235
          %s237 = smul.u32 4, %s18
        $region40: #{tpu_custom_call.1} parent=31 // pred_fallthru
          _
      $region32: #{tpu_custom_call.1} parent=5 // pred_fallthru
        _
      %p238 = scmp.le.s32.totalorder 1, %s18
      %p239 = scmp.lt.s32.totalorder %s18, 3
      %p240 = pnand %p238, %p239
      %p241 = pneg %p240
      // Predicated region
      $region41: #{tpu_custom_call.1} parent=5 // pred_check
        _
      $region42: #{tpu_custom_call.1} parent=5 // pred_check_branch
        %243 = sbr.rel (%p240) target = $region44
      $region43: #{tpu_custom_call.1} parent=5 // pred_region
        %s244 = ssub.s32 %s18, 1
        %s245 = sand.u32 %s31, 1
        %s246 = scalar_lea.sflag [#allocation3], %s245
        %s247 = sand.u32 %s31, 1
        %s248 = smul.addr %s247, 4
        %s249 = scalar_lea.vmem [#allocation2], %s248
        // Predicated region
        $region45: #{tpu_custom_call.1} parent=43 // pred_check
          %p250 = pneg %p44
        $region46: #{tpu_custom_call.1} parent=43 // pred_check_branch
          %252 = sbr.rel (%p250) target = $region48
        $region47: #{tpu_custom_call.1} parent=43 // pred_region
          %253 = dma.done %s246, 64
        $region48: #{tpu_custom_call.1} parent=43 // pred_fallthru
          _
        %s254 = sand.u32 %s31, 1
        %s255 = scalar_lea.sflag [#allocation3], %s254
        %s256 = sand.u32 %s31, 1
        %s257 = smul.addr %s256, 4
        %s258 = scalar_lea.vmem [#allocation2], %s257
        %p259 = pneg %p44
        %p260 = pneg %p41
        %s261 = smul.u32 4, %s23
        %p262 = scmp.lt.s32.totalorder %s261, 7
        %s263 = scalar_select %p262, %s261, 7
        %s264 = smul.addr %s263, 8
        %s265 = scalar_lea.vmem %s1, %s264
        %p266 = pneg %p70
        %p267 = pneg %p67
        %p268 = pneg %p91
        %p269 = pneg %p88
        %p270 = pneg %p112
        %p271 = pneg %p109
        %p272 = pneg %p133
        %p273 = pneg %p130
        %p274 = pneg %p154
        %p275 = pneg %p151
        %p276 = pneg %p180
        %p277 = pneg %p177
        %s278 = sand.u32 %s167, 1
        %s279 = scalar_lea.sflag [#allocation4], %s278
        %s280 = sand.u32 %s167, 1
        %s281 = smul.addr %s280, 4
        %s282 = scalar_lea.vmem [#allocation5], %s281
        %s283 = smul.u32 4, %s23
        %p284 = scmp.lt.s32.totalorder %s283, 7
        %s285 = scalar_select %p284, %s283, 7
        %s286 = smul.addr %s285, 8
        %s287 = scalar_lea.vmem %s1, %s286
        %s288 = smul.u32 4, %s23
        %v289 = vld [vmem:[%s249] sm:$0xf]
        %v290 = vld [vmem:[%s287] sm:$0xff]
        %v291 = vld [vmem:[%s287 + $0x8] sm:$0xff]
        %v292 = vld [vmem:[%s287 + $0x10] sm:$0xff]
        %v293 = vld [vmem:[%s287 + $0x18] sm:$0xff]
        %v294 = vld [vmem:[%s2] sm:$0xff]
        %v295 = vld [vmem:[%s2 + $0x8] sm:$0xff]
        %v296 = vld [vmem:[%s2 + $0x10] sm:$0xff]
        %v297 = vld [vmem:[%s2 + $0x18] sm:$0xff]
        %v298 = vld [vmem:[%s4] sm:$0x1]
        %v300 = vlaneseq
        %v301 = vshrl.u32 %v300, 7
        %v302 = vsub.s32 0, %v301
        %v303 = vrot.slane %v298, %v302
        %vm305 = vcmask 261120
        %v307 = vsel %vm305, %v289, 0
        %309 = vmatprep.subr.mxu0 0.0
        %310 = vmatpush1.msra.mxu0 %v294
        %311 = vmatprep.subr.mxu0 0.0
        %312 = vmatpush1.msra.mxu0 %v295
        %313 = vmatprep.subr.mxu0 0.0
        %314 = vmatpush1.msra.mxu0 %v296
        %315 = vmatprep.subr.mxu0 0.0
        %316 = vmatpush1.msra.mxu0 %v297
        %317 = vmatprep.subr.mxu0 0.0
        %318 = vmatpush1.msra.mxu0 0.0
        %319 = vmatprep.subr.mxu0 0.0
        %320 = vmatpush1.msra.mxu0 0.0
        %321 = vmatprep.subr.mxu0 0.0
        %322 = vmatpush1.msra.mxu0 0.0
        %323 = vmatprep.subr.mxu0 0.0
        %324 = vmatpush1.msra.mxu0 0.0
        %325 = vmatprep.subr.mxu0 0.0
        %326 = vmatpush1.msra.mxu0 0.0
        %327 = vmatprep.subr.mxu0 0.0
        %328 = vmatpush1.msra.mxu0 0.0
        %329 = vmatprep.subr.mxu0 0.0
        %330 = vmatpush1.msra.mxu0 0.0
        %331 = vmatprep.subr.mxu0 0.0
        %332 = vmatpush1.msra.mxu0 0.0
        %333 = vmatprep.subr.mxu0 0.0
        %334 = vmatpush1.msra.mxu0 0.0
        %335 = vmatprep.subr.mxu0 0.0
        %336 = vmatpush1.msra.mxu0 0.0
        %337 = vmatprep.subr.mxu0 0.0
        %338 = vmatpush1.msra.mxu0 0.0
        %339 = vmatprep.subr.mxu0 0.0
        %340 = vmatpush1.msra.mxu0 0.0
        %341 = vmatprep.subr.mxu0 0.0
        %342 = vmatpush1.msra.mxu0 0.0
        %343 = vmatprep.subr.mxu0 0.0
        %344 = vmatpush1.msra.mxu0 0.0
        %345 = vmatprep.subr.mxu0 0.0
        %346 = vmatpush1.msra.mxu0 0.0
        %347 = vmatprep.subr.mxu0 0.0
        %348 = vmatpush1.msra.mxu0 0.0
        %349 = vmatprep.subr.mxu0 0.0
        %350 = vmatpush1.msra.mxu0 0.0
        %351 = vmatprep.subr.mxu0 0.0
        %352 = vmatpush1.msra.mxu0 0.0
        %353 = vmatprep.subr.mxu0 0.0
        %354 = vmatpush1.msra.mxu0 0.0
        %355 = vmatprep.subr.mxu0 0.0
        %356 = vmatpush1.msra.mxu0 0.0
        %357 = vmatprep.subr.mxu0 0.0
        %358 = vmatpush1.msra.mxu0 0.0
        %359 = vmatprep.subr.mxu0 0.0
        %360 = vmatpush1.msra.mxu0 0.0
        %361 = vmatprep.subr.mxu0 0.0
        %362 = vmatpush1.msra.mxu0 0.0
        %363 = vmatprep.subr.mxu0 0.0
        %364 = vmatpush1.msra.mxu0 0.0
        %365 = vmatprep.subr.mxu0 0.0
        %366 = vmatpush1.msra.mxu0 0.0
        %367 = vmatprep.subr.mxu0 0.0
        %368 = vmatpush1.msra.mxu0 0.0
        %369 = vmatprep.subr.mxu0 0.0
        %370 = vmatpush1.msra.mxu0 0.0
        %371 = vmatprep.subr.mxu0 0.0
        %372 = vmatpush1.msra.mxu0 0.0
        %373 = vmatprep.mubr.f32.mxu0 0.0
        %374 = vmatmul.mubr.f32.gmra.mrb[0].mxu0 %v307
        %v375 = vpop.f32.mrb[0].mxu0
        %v376 = vadd.f32 %v303, %v375
        %v377 = vpop.f32.mrb[0].mxu0
        %378 = vdwg.mxu0
        %v381 = vunpack.c.l.s4 1966171168
        %v382 = vunpack.c.0.s8 %v381
        %v383 = vlaneseq
        %v384 = vshrl.u32 %v383, 7
        %v385 = vsub.s32 %v382, %v384
        %v386 = vrot.slane %v376, %v385
        %v387 = vcombine.high %v386, %v386
        %v389 = vunpack.c.l.s4 1966171168
        %v390 = vunpack.c.0.s8 %v389
        %v391 = vlaneseq
        %v392 = vshrl.u32 %v391, 7
        %v393 = vsub.s32 %v390, %v392
        %v394 = vrot.slane %v386, %v393
        %v396 = vunpack.c.l.s4 1966171168
        %v397 = vunpack.c.0.s8 %v396
        %v398 = vlaneseq
        %v399 = vshrl.u32 %v398, 7
        %v400 = vsub.s32 %v397, %v399
        %v401 = vrot.slane %v387, %v400
        %v402 = vcombine.high %v394, %v394
        %v403 = vcombine.high %v401, %v401
        %v404 = vld [vmem:[%s3] sm:$0xff]
        %v405 = vld [vmem:[%s3 + $0x8] sm:$0xff]
        %v406 = vld [vmem:[%s3 + $0x10] sm:$0xff]
        %v407 = vld [vmem:[%s3 + $0x18] sm:$0xff]
        %v408 = vld [vmem:[%s3 + $0x20] sm:$0xff]
        %v409 = vld [vmem:[%s3 + $0x28] sm:$0xff]
        %v410 = vld [vmem:[%s3 + $0x30] sm:$0xff]
        %v411 = vld [vmem:[%s3 + $0x38] sm:$0xff]
        %vm412 = vcmask 523264
        %v414 = vsel %vm412, %v290, 0
        %v417 = vsel %vm412, %v291, 0
        %v420 = vsel %vm412, %v292, 0
        %v423 = vsel %vm412, %v293, 0
        %425 = vmatprep.subr.mxu0 0.0
        %426 = vmatpush1.msra.mxu0 %v404
        %427 = vmatprep.subr.mxu0 0.0
        %428 = vmatpush1.msra.mxu0 %v405
        %429 = vmatprep.subr.mxu0 0.0
        %430 = vmatpush1.msra.mxu0 %v406
        %431 = vmatprep.subr.mxu0 0.0
        %432 = vmatpush1.msra.mxu0 %v407
        %433 = vmatprep.subr.mxu0 0.0
        %434 = vmatpush1.msra.mxu0 %v408
        %435 = vmatprep.subr.mxu0 0.0
        %436 = vmatpush1.msra.mxu0 %v409
        %437 = vmatprep.subr.mxu0 0.0
        %438 = vmatpush1.msra.mxu0 %v410
        %439 = vmatprep.subr.mxu0 0.0
        %440 = vmatpush1.msra.mxu0 %v411
        %441 = vmatprep.subr.mxu0 0.0
        %442 = vmatpush1.msra.mxu0 0.0
        %443 = vmatprep.subr.mxu0 0.0
        %444 = vmatpush1.msra.mxu0 0.0
        %445 = vmatprep.subr.mxu0 0.0
        %446 = vmatpush1.msra.mxu0 0.0
        %447 = vmatprep.subr.mxu0 0.0
        %448 = vmatpush1.msra.mxu0 0.0
        %449 = vmatprep.subr.mxu0 0.0
        %450 = vmatpush1.msra.mxu0 0.0
        %451 = vmatprep.subr.mxu0 0.0
        %452 = vmatpush1.msra.mxu0 0.0
        %453 = vmatprep.subr.mxu0 0.0
        %454 = vmatpush1.msra.mxu0 0.0
        %455 = vmatprep.subr.mxu0 0.0
        %456 = vmatpush1.msra.mxu0 0.0
        %457 = vmatprep.subr.mxu0 0.0
        %458 = vmatpush1.msra.mxu0 0.0
        %459 = vmatprep.subr.mxu0 0.0
        %460 = vmatpush1.msra.mxu0 0.0
        %461 = vmatprep.subr.mxu0 0.0
        %462 = vmatpush1.msra.mxu0 0.0
        %463 = vmatprep.subr.mxu0 0.0
        %464 = vmatpush1.msra.mxu0 0.0
        %465 = vmatprep.subr.mxu0 0.0
        %466 = vmatpush1.msra.mxu0 0.0
        %467 = vmatprep.subr.mxu0 0.0
        %468 = vmatpush1.msra.mxu0 0.0
        %469 = vmatprep.subr.mxu0 0.0
        %470 = vmatpush1.msra.mxu0 0.0
        %471 = vmatprep.subr.mxu0 0.0
        %472 = vmatpush1.msra.mxu0 0.0
        %473 = vmatprep.subr.mxu0 0.0
        %474 = vmatpush1.msra.mxu0 0.0
        %475 = vmatprep.subr.mxu0 0.0
        %476 = vmatpush1.msra.mxu0 0.0
        %477 = vmatprep.subr.mxu0 0.0
        %478 = vmatpush1.msra.mxu0 0.0
        %479 = vmatprep.subr.mxu0 0.0
        %480 = vmatpush1.msra.mxu0 0.0
        %481 = vmatprep.subr.mxu0 0.0
        %482 = vmatpush1.msra.mxu0 0.0
        %483 = vmatprep.subr.mxu0 0.0
        %484 = vmatpush1.msra.mxu0 0.0
        %485 = vmatprep.subr.mxu0 0.0
        %486 = vmatpush1.msra.mxu0 0.0
        %487 = vmatprep.subr.mxu0 0.0
        %488 = vmatpush1.msra.mxu0 0.0
        %489 = vmatprep.mubr.f32.mxu0 0.0
        %490 = vmatmul.mubr.f32.gmra.mrb[0].mxu0 %v414
        %v491 = vpop.f32.mrb[0].mxu0
        %v492 = vadd.f32 0.0, %v491
        %v493 = vpop.f32.mrb[0].mxu0
        %494 = vmatprep.mubr.f32.mxu0 0.0
        %495 = vmatmul.mubr.f32.gmra.mrb[0].mxu0 %v417
        %v496 = vpop.f32.mrb[0].mxu0
        %v497 = vadd.f32 0.0, %v496
        %v498 = vpop.f32.mrb[0].mxu0
        %499 = vmatprep.mubr.f32.mxu0 0.0
        %500 = vmatmul.mubr.f32.gmra.mrb[0].mxu0 %v420
        %v501 = vpop.f32.mrb[0].mxu0
        %v502 = vadd.f32 0.0, %v501
        %v503 = vpop.f32.mrb[0].mxu0
        %504 = vmatprep.mubr.f32.mxu0 0.0
        %505 = vmatmul.mubr.f32.gmra.mrb[0].mxu0 %v423
        %v506 = vpop.f32.mrb[0].mxu0
        %v507 = vadd.f32 0.0, %v506
        %v508 = vpop.f32.mrb[0].mxu0
        %509 = vdwg.mxu0
        %v510 = vlaneseq
        %v511 = vshrl.u32 %v510, 7
        %v512 = vsub.s32 0, %v511
        %v513 = vrot.slane %v394, %v512
        %v514 = vlaneseq
        %v515 = vshrl.u32 %v514, 7
        %v516 = vsub.s32 0, %v515
        %v517 = vrot.slane %v401, %v516
        %v518 = vlaneseq
        %v519 = vshrl.u32 %v518, 7
        %v520 = vsub.s32 0, %v519
        %v521 = vrot.slane %v402, %v520
        %v522 = vlaneseq
        %v523 = vshrl.u32 %v522, 7
        %v524 = vsub.s32 0, %v523
        %v525 = vrot.slane %v403, %v524
        %v530 = vadd.f32 %v492, %v513
        %v531 = vadd.f32 %v497, %v517
        %v532 = vadd.f32 %v502, %v521
        %v533 = vadd.f32 %v507, %v525
        %v534 = vtanh.pop %v530
        %v535 = vtanh.pop %v531
        %v536 = vtanh.pop %v532
        %v537 = vtanh.pop %v533
        %v538 = vld [vmem:[%s5] sm:$0x1]
        %v540 = vlaneseq
        %v541 = vshrl.u32 %v540, 7
        %v542 = vsub.s32 0, %v541
        %v543 = vrot.slane %v538, %v542
        %v545 = vmul.f32 %v534, %v543
        %v546 = vmul.f32 %v535, %v543
        %v547 = vmul.f32 %v536, %v543
        %v548 = vmul.f32 %v537, %v543
        %v549 = vsel %vm305, %v545, 0.0
        %550 = vadd.xlane.f32.xlu0 %v549
        %v551 = vpop.xlane.xlu0 %550
        %v552 = vsel %vm305, %v546, 0.0
        %553 = vadd.xlane.f32.xlu0 %v552
        %v554 = vpop.xlane.xlu0 %553
        %v555 = vsel %vm305, %v547, 0.0
        %556 = vadd.xlane.f32.xlu0 %v555
        %v557 = vpop.xlane.xlu0 %556
        %v558 = vsel %vm305, %v548, 0.0
        %559 = vadd.xlane.f32.xlu0 %v558
        %v560 = vpop.xlane.xlu0 %559
        %v565 = vlaneseq
        %v566 = vand.u32 %v565, 127
        %v567 = vlaneseq
        %v568 = vshrl.u32 %v567, 7
        %v569 = vsub.s32 %v566, %v568
        %v570 = vrot.slane %v551, %v569
        %v571 = vlaneseq
        %v572 = vshrl.u32 %v571, 7
        %v573 = vsub.s32 %v566, %v572
        %v574 = vrot.slane %v554, %v573
        %v575 = vlaneseq
        %v576 = vshrl.u32 %v575, 7
        %v577 = vsub.s32 %v566, %v576
        %v578 = vrot.slane %v557, %v577
        %v579 = vlaneseq
        %v580 = vshrl.u32 %v579, 7
        %v581 = vsub.s32 %v566, %v580
        %v582 = vrot.slane %v560, %v581
        %vm583 = vcmask 1041409
        %v584 = vsel %vm583, %v574, %v570
        %vm585 = vcmask 1042434
        %v586 = vsel %vm585, %v578, %v584
        %vm587 = vcmask 1043459
        %v588 = vsel %vm587, %v582, %v586
        %vm590 = vcmask 60416
        %v591 = vsel %vm590, %v588, -inf
        %592 = vmax.xlane.f32.xlu0 %v591
        %v593 = vpop.xlane.xlu0 %592
        %v595 = vlaneseq
        %v596 = vshrl.u32 %v595, 7
        %v597 = vsub.s32 0, %v596
        %v598 = vrot.slane %v593, %v597
        %v599 = vlaneseq
        %v600 = vshrl.u32 %v599, 7
        %v601 = vsub.s32 1, %v600
        %v602 = vrot.slane %v593, %v601
        %v603 = vlaneseq
        %v604 = vshrl.u32 %v603, 7
        %v605 = vsub.s32 2, %v604
        %v606 = vrot.slane %v593, %v605
        %v607 = vlaneseq
        %v608 = vshrl.u32 %v607, 7
        %v609 = vsub.s32 3, %v608
        %v610 = vrot.slane %v593, %v609
        %v615 = vsub.f32 %v551, %v598
        %v616 = vsub.f32 %v554, %v602
        %v617 = vsub.f32 %v557, %v606
        %v618 = vsub.f32 %v560, %v610
        %v619 = vmul.f32 %v615, 1.442695
        %v620 = vpow.pop %v619
        %v621 = vmul.f32 %v616, 1.442695
        %v622 = vpow.pop %v621
        %v623 = vmul.f32 %v617, 1.442695
        %v624 = vpow.pop %v623
        %v625 = vmul.f32 %v618, 1.442695
        %v626 = vpow.pop %v625
        %631 = vset.pattern.permute.xlu0 0
        %632 = vperm.xlu0 %631, %v620
        %v633 = vpop.permute.xlu0 %632
        %634 = vset.pattern.permute.xlu0 0
        %635 = vperm.xlu0 %634, %v622
        %v636 = vpop.permute.xlu0 %635
        %637 = vset.pattern.permute.xlu0 0
        %638 = vperm.xlu0 %637, %v624
        %v639 = vpop.permute.xlu0 %638
        %640 = vset.pattern.permute.xlu0 0
        %641 = vperm.xlu0 %640, %v626
        %v642 = vpop.permute.xlu0 %641
        %v643 = vlaneseq
        %v644 = vshrl.u32 %v643, 7
        %v645 = vsub.s32 %v566, %v644
        %v646 = vrot.slane %v633, %v645
        %v647 = vlaneseq
        %v648 = vshrl.u32 %v647, 7
        %v649 = vsub.s32 %v566, %v648
        %v650 = vrot.slane %v636, %v649
        %v651 = vlaneseq
        %v652 = vshrl.u32 %v651, 7
        %v653 = vsub.s32 %v566, %v652
        %v654 = vrot.slane %v639, %v653
        %v655 = vlaneseq
        %v656 = vshrl.u32 %v655, 7
        %v657 = vsub.s32 %v566, %v656
        %v658 = vrot.slane %v642, %v657
        %v659 = vsel %vm583, %v650, %v646
        %v660 = vsel %vm585, %v654, %v659
        %v661 = vsel %vm587, %v658, %v660
        %v663 = vsel %vm590, %v661, 0.0
        %664 = vadd.xlane.f32.xlu0 %v663
        %v665 = vpop.xlane.xlu0 %664
        %v666 = vrcp.pop %v665
        %v668 = vlaneseq
        %v669 = vshrl.u32 %v668, 7
        %v670 = vsub.s32 0, %v669
        %v671 = vrot.slane %v666, %v670
        %v672 = vlaneseq
        %v673 = vshrl.u32 %v672, 7
        %v674 = vsub.s32 1, %v673
        %v675 = vrot.slane %v666, %v674
        %v676 = vlaneseq
        %v677 = vshrl.u32 %v676, 7
        %v678 = vsub.s32 2, %v677
        %v679 = vrot.slane %v666, %v678
        %v680 = vlaneseq
        %v681 = vshrl.u32 %v680, 7
        %v682 = vsub.s32 3, %v681
        %v683 = vrot.slane %v666, %v682
        %v688 = vmul.f32 %v620, %v671
        %v689 = vmul.f32 %v622, %v675
        %v690 = vmul.f32 %v624, %v679
        %v691 = vmul.f32 %v626, %v683
        %693 = vset.pattern.permute.xlu0 0
        %694 = vperm.xlu0 %693, %v688
        %v695 = vpop.permute.xlu0 %694
        %v696 = vlaneseq
        %v697 = vshrl.u32 %v696, 7
        %v698 = vsub.s32 %v566, %v697
        %v699 = vrot.slane %v695, %v698
        %vm700 = vcmask 64512
        %v701 = vsel %vm700, %v699, 0
        %703 = vmatprep.subr.mxu0 0.0
        %704 = vmatpush1.msra.mxu0 %v290
        %705 = vmatprep.subr.mxu0 0.0
        %706 = vmatpush1.msra.mxu0 0.0
        %707 = vmatprep.subr.mxu0 0.0
        %708 = vmatpush1.msra.mxu0 0.0
        %709 = vmatprep.subr.mxu0 0.0
        %710 = vmatpush1.msra.mxu0 0.0
        %711 = vmatprep.subr.mxu0 0.0
        %712 = vmatpush1.msra.mxu0 0.0
        %713 = vmatprep.subr.mxu0 0.0
        %714 = vmatpush1.msra.mxu0 0.0
        %715 = vmatprep.subr.mxu0 0.0
        %716 = vmatpush1.msra.mxu0 0.0
        %717 = vmatprep.subr.mxu0 0.0
        %718 = vmatpush1.msra.mxu0 0.0
        %719 = vmatprep.subr.mxu0 0.0
        %720 = vmatpush1.msra.mxu0 0.0
        %721 = vmatprep.subr.mxu0 0.0
        %722 = vmatpush1.msra.mxu0 0.0
        %723 = vmatprep.subr.mxu0 0.0
        %724 = vmatpush1.msra.mxu0 0.0
        %725 = vmatprep.subr.mxu0 0.0
        %726 = vmatpush1.msra.mxu0 0.0
        %727 = vmatprep.subr.mxu0 0.0
        %728 = vmatpush1.msra.mxu0 0.0
        %729 = vmatprep.subr.mxu0 0.0
        %730 = vmatpush1.msra.mxu0 0.0
        %731 = vmatprep.subr.mxu0 0.0
        %732 = vmatpush1.msra.mxu0 0.0
        %733 = vmatprep.subr.mxu0 0.0
        %734 = vmatpush1.msra.mxu0 0.0
        %735 = vmatprep.subr.mxu0 0.0
        %736 = vmatpush1.msra.mxu0 0.0
        %737 = vmatprep.subr.mxu0 0.0
        %738 = vmatpush1.msra.mxu0 0.0
        %739 = vmatprep.subr.mxu0 0.0
        %740 = vmatpush1.msra.mxu0 0.0
        %741 = vmatprep.subr.mxu0 0.0
        %742 = vmatpush1.msra.mxu0 0.0
        %743 = vmatprep.subr.mxu0 0.0
        %744 = vmatpush1.msra.mxu0 0.0
        %745 = vmatprep.subr.mxu0 0.0
        %746 = vmatpush1.msra.mxu0 0.0
        %747 = vmatprep.subr.mxu0 0.0
        %748 = vmatpush1.msra.mxu0 0.0
        %749 = vmatprep.subr.mxu0 0.0
        %750 = vmatpush1.msra.mxu0 0.0
        %751 = vmatprep.subr.mxu0 0.0
        %752 = vmatpush1.msra.mxu0 0.0
        %753 = vmatprep.subr.mxu0 0.0
        %754 = vmatpush1.msra.mxu0 0.0
        %755 = vmatprep.subr.mxu0 0.0
        %756 = vmatpush1.msra.mxu0 0.0
        %757 = vmatprep.subr.mxu0 0.0
        %758 = vmatpush1.msra.mxu0 0.0
        %759 = vmatprep.subr.mxu0 0.0
        %760 = vmatpush1.msra.mxu0 0.0
        %761 = vmatprep.subr.mxu0 0.0
        %762 = vmatpush1.msra.mxu0 0.0
        %763 = vmatprep.subr.mxu0 0.0
        %764 = vmatpush1.msra.mxu0 0.0
        %765 = vmatprep.subr.mxu0 0.0
        %766 = vmatpush1.msra.mxu0 0.0
        %767 = vmatprep.mubr.f32.mxu0 0.0
        %768 = vmatmul.mubr.f32.gmra.mrb[0].mxu0 %v701
        %v769 = vpop.f32.mrb[0].mxu0
        %v770 = vadd.f32 0.0, %v769
        %v771 = vpop.f32.mrb[0].mxu0
        %772 = vdwg.mxu0
        %774 = vset.pattern.permute.xlu0 0
        %775 = vperm.xlu0 %774, %v689
        %v776 = vpop.permute.xlu0 %775
        %v777 = vlaneseq
        %v778 = vshrl.u32 %v777, 7
        %v779 = vsub.s32 %v566, %v778
        %v780 = vrot.slane %v776, %v779
        %v781 = vsel %vm700, %v780, 0
        %783 = vmatprep.subr.mxu0 0.0
        %784 = vmatpush1.msra.mxu0 %v291
        %785 = vmatprep.subr.mxu0 0.0
        %786 = vmatpush1.msra.mxu0 0.0
        %787 = vmatprep.subr.mxu0 0.0
        %788 = vmatpush1.msra.mxu0 0.0
        %789 = vmatprep.subr.mxu0 0.0
        %790 = vmatpush1.msra.mxu0 0.0
        %791 = vmatprep.subr.mxu0 0.0
        %792 = vmatpush1.msra.mxu0 0.0
        %793 = vmatprep.subr.mxu0 0.0
        %794 = vmatpush1.msra.mxu0 0.0
        %795 = vmatprep.subr.mxu0 0.0
        %796 = vmatpush1.msra.mxu0 0.0
        %797 = vmatprep.subr.mxu0 0.0
        %798 = vmatpush1.msra.mxu0 0.0
        %799 = vmatprep.subr.mxu0 0.0
        %800 = vmatpush1.msra.mxu0 0.0
        %801 = vmatprep.subr.mxu0 0.0
        %802 = vmatpush1.msra.mxu0 0.0
        %803 = vmatprep.subr.mxu0 0.0
        %804 = vmatpush1.msra.mxu0 0.0
        %805 = vmatprep.subr.mxu0 0.0
        %806 = vmatpush1.msra.mxu0 0.0
        %807 = vmatprep.subr.mxu0 0.0
        %808 = vmatpush1.msra.mxu0 0.0
        %809 = vmatprep.subr.mxu0 0.0
        %810 = vmatpush1.msra.mxu0 0.0
        %811 = vmatprep.subr.mxu0 0.0
        %812 = vmatpush1.msra.mxu0 0.0
        %813 = vmatprep.subr.mxu0 0.0
        %814 = vmatpush1.msra.mxu0 0.0
        %815 = vmatprep.subr.mxu0 0.0
        %816 = vmatpush1.msra.mxu0 0.0
        %817 = vmatprep.subr.mxu0 0.0
        %818 = vmatpush1.msra.mxu0 0.0
        %819 = vmatprep.subr.mxu0 0.0
        %820 = vmatpush1.msra.mxu0 0.0
        %821 = vmatprep.subr.mxu0 0.0
        %822 = vmatpush1.msra.mxu0 0.0
        %823 = vmatprep.subr.mxu0 0.0
        %824 = vmatpush1.msra.mxu0 0.0
        %825 = vmatprep.subr.mxu0 0.0
        %826 = vmatpush1.msra.mxu0 0.0
        %827 = vmatprep.subr.mxu0 0.0
        %828 = vmatpush1.msra.mxu0 0.0
        %829 = vmatprep.subr.mxu0 0.0
        %830 = vmatpush1.msra.mxu0 0.0
        %831 = vmatprep.subr.mxu0 0.0
        %832 = vmatpush1.msra.mxu0 0.0
        %833 = vmatprep.subr.mxu0 0.0
        %834 = vmatpush1.msra.mxu0 0.0
        %835 = vmatprep.subr.mxu0 0.0
        %836 = vmatpush1.msra.mxu0 0.0
        %837 = vmatprep.subr.mxu0 0.0
        %838 = vmatpush1.msra.mxu0 0.0
        %839 = vmatprep.subr.mxu0 0.0
        %840 = vmatpush1.msra.mxu0 0.0
        %841 = vmatprep.subr.mxu0 0.0
        %842 = vmatpush1.msra.mxu0 0.0
        %843 = vmatprep.subr.mxu0 0.0
        %844 = vmatpush1.msra.mxu0 0.0
        %845 = vmatprep.subr.mxu0 0.0
        %846 = vmatpush1.msra.mxu0 0.0
        %847 = vmatprep.mubr.f32.mxu0 0.0
        %848 = vmatmul.mubr.f32.gmra.mrb[0].mxu0 %v781
        %v849 = vpop.f32.mrb[0].mxu0
        %v850 = vadd.f32 0.0, %v849
        %v851 = vpop.f32.mrb[0].mxu0
        %852 = vdwg.mxu0
        %854 = vset.pattern.permute.xlu0 0
        %855 = vperm.xlu0 %854, %v690
        %v856 = vpop.permute.xlu0 %855
        %v857 = vlaneseq
        %v858 = vshrl.u32 %v857, 7
        %v859 = vsub.s32 %v566, %v858
        %v860 = vrot.slane %v856, %v859
        %v861 = vsel %vm700, %v860, 0
        %863 = vmatprep.subr.mxu0 0.0
        %864 = vmatpush1.msra.mxu0 %v292
        %865 = vmatprep.subr.mxu0 0.0
        %866 = vmatpush1.msra.mxu0 0.0
        %867 = vmatprep.subr.mxu0 0.0
        %868 = vmatpush1.msra.mxu0 0.0
        %869 = vmatprep.subr.mxu0 0.0
        %870 = vmatpush1.msra.mxu0 0.0
        %871 = vmatprep.subr.mxu0 0.0
        %872 = vmatpush1.msra.mxu0 0.0
        %873 = vmatprep.subr.mxu0 0.0
        %874 = vmatpush1.msra.mxu0 0.0
        %875 = vmatprep.subr.mxu0 0.0
        %876 = vmatpush1.msra.mxu0 0.0
        %877 = vmatprep.subr.mxu0 0.0
        %878 = vmatpush1.msra.mxu0 0.0
        %879 = vmatprep.subr.mxu0 0.0
        %880 = vmatpush1.msra.mxu0 0.0
        %881 = vmatprep.subr.mxu0 0.0
        %882 = vmatpush1.msra.mxu0 0.0
        %883 = vmatprep.subr.mxu0 0.0
        %884 = vmatpush1.msra.mxu0 0.0
        %885 = vmatprep.subr.mxu0 0.0
        %886 = vmatpush1.msra.mxu0 0.0
        %887 = vmatprep.subr.mxu0 0.0
        %888 = vmatpush1.msra.mxu0 0.0
        %889 = vmatprep.subr.mxu0 0.0
        %890 = vmatpush1.msra.mxu0 0.0
        %891 = vmatprep.subr.mxu0 0.0
        %892 = vmatpush1.msra.mxu0 0.0
        %893 = vmatprep.subr.mxu0 0.0
        %894 = vmatpush1.msra.mxu0 0.0
        %895 = vmatprep.subr.mxu0 0.0
        %896 = vmatpush1.msra.mxu0 0.0
        %897 = vmatprep.subr.mxu0 0.0
        %898 = vmatpush1.msra.mxu0 0.0
        %899 = vmatprep.subr.mxu0 0.0
        %900 = vmatpush1.msra.mxu0 0.0
        %901 = vmatprep.subr.mxu0 0.0
        %902 = vmatpush1.msra.mxu0 0.0
        %903 = vmatprep.subr.mxu0 0.0
        %904 = vmatpush1.msra.mxu0 0.0
        %905 = vmatprep.subr.mxu0 0.0
        %906 = vmatpush1.msra.mxu0 0.0
        %907 = vmatprep.subr.mxu0 0.0
        %908 = vmatpush1.msra.mxu0 0.0
        %909 = vmatprep.subr.mxu0 0.0
        %910 = vmatpush1.msra.mxu0 0.0
        %911 = vmatprep.subr.mxu0 0.0
        %912 = vmatpush1.msra.mxu0 0.0
        %913 = vmatprep.subr.mxu0 0.0
        %914 = vmatpush1.msra.mxu0 0.0
        %915 = vmatprep.subr.mxu0 0.0
        %916 = vmatpush1.msra.mxu0 0.0
        %917 = vmatprep.subr.mxu0 0.0
        %918 = vmatpush1.msra.mxu0 0.0
        %919 = vmatprep.subr.mxu0 0.0
        %920 = vmatpush1.msra.mxu0 0.0
        %921 = vmatprep.subr.mxu0 0.0
        %922 = vmatpush1.msra.mxu0 0.0
        %923 = vmatprep.subr.mxu0 0.0
        %924 = vmatpush1.msra.mxu0 0.0
        %925 = vmatprep.subr.mxu0 0.0
        %926 = vmatpush1.msra.mxu0 0.0
        %927 = vmatprep.mubr.f32.mxu0 0.0
        %928 = vmatmul.mubr.f32.gmra.mrb[0].mxu0 %v861
        %v929 = vpop.f32.mrb[0].mxu0
        %v930 = vadd.f32 0.0, %v929
        %v931 = vpop.f32.mrb[0].mxu0
        %932 = vdwg.mxu0
        %934 = vset.pattern.permute.xlu0 0
        %935 = vperm.xlu0 %934, %v691
        %v936 = vpop.permute.xlu0 %935
        %v937 = vlaneseq
        %v938 = vshrl.u32 %v937, 7
        %v939 = vsub.s32 %v566, %v938
        %v940 = vrot.slane %v936, %v939
        %v941 = vsel %vm700, %v940, 0
        %943 = vmatprep.subr.mxu0 0.0
        %944 = vmatpush1.msra.mxu0 %v293
        %945 = vmatprep.subr.mxu0 0.0
        %946 = vmatpush1.msra.mxu0 0.0
        %947 = vmatprep.subr.mxu0 0.0
        %948 = vmatpush1.msra.mxu0 0.0
        %949 = vmatprep.subr.mxu0 0.0
        %950 = vmatpush1.msra.mxu0 0.0
        %951 = vmatprep.subr.mxu0 0.0
        %952 = vmatpush1.msra.mxu0 0.0
        %953 = vmatprep.subr.mxu0 0.0
        %954 = vmatpush1.msra.mxu0 0.0
        %955 = vmatprep.subr.mxu0 0.0
        %956 = vmatpush1.msra.mxu0 0.0
        %957 = vmatprep.subr.mxu0 0.0
        %958 = vmatpush1.msra.mxu0 0.0
        %959 = vmatprep.subr.mxu0 0.0
        %960 = vmatpush1.msra.mxu0 0.0
        %961 = vmatprep.subr.mxu0 0.0
        %962 = vmatpush1.msra.mxu0 0.0
        %963 = vmatprep.subr.mxu0 0.0
        %964 = vmatpush1.msra.mxu0 0.0
        %965 = vmatprep.subr.mxu0 0.0
        %966 = vmatpush1.msra.mxu0 0.0
        %967 = vmatprep.subr.mxu0 0.0
        %968 = vmatpush1.msra.mxu0 0.0
        %969 = vmatprep.subr.mxu0 0.0
        %970 = vmatpush1.msra.mxu0 0.0
        %971 = vmatprep.subr.mxu0 0.0
        %972 = vmatpush1.msra.mxu0 0.0
        %973 = vmatprep.subr.mxu0 0.0
        %974 = vmatpush1.msra.mxu0 0.0
        %975 = vmatprep.subr.mxu0 0.0
        %976 = vmatpush1.msra.mxu0 0.0
        %977 = vmatprep.subr.mxu0 0.0
        %978 = vmatpush1.msra.mxu0 0.0
        %979 = vmatprep.subr.mxu0 0.0
        %980 = vmatpush1.msra.mxu0 0.0
        %981 = vmatprep.subr.mxu0 0.0
        %982 = vmatpush1.msra.mxu0 0.0
        %983 = vmatprep.subr.mxu0 0.0
        %984 = vmatpush1.msra.mxu0 0.0
        %985 = vmatprep.subr.mxu0 0.0
        %986 = vmatpush1.msra.mxu0 0.0
        %987 = vmatprep.subr.mxu0 0.0
        %988 = vmatpush1.msra.mxu0 0.0
        %989 = vmatprep.subr.mxu0 0.0
        %990 = vmatpush1.msra.mxu0 0.0
        %991 = vmatprep.subr.mxu0 0.0
        %992 = vmatpush1.msra.mxu0 0.0
        %993 = vmatprep.subr.mxu0 0.0
        %994 = vmatpush1.msra.mxu0 0.0
        %995 = vmatprep.subr.mxu0 0.0
        %996 = vmatpush1.msra.mxu0 0.0
        %997 = vmatprep.subr.mxu0 0.0
        %998 = vmatpush1.msra.mxu0 0.0
        %999 = vmatprep.subr.mxu0 0.0
        %1000 = vmatpush1.msra.mxu0 0.0
        %1001 = vmatprep.subr.mxu0 0.0
        %1002 = vmatpush1.msra.mxu0 0.0
        %1003 = vmatprep.subr.mxu0 0.0
        %1004 = vmatpush1.msra.mxu0 0.0
        %1005 = vmatprep.subr.mxu0 0.0
        %1006 = vmatpush1.msra.mxu0 0.0
        %1007 = vmatprep.mubr.f32.mxu0 0.0
        %1008 = vmatmul.mubr.f32.gmra.mrb[0].mxu0 %v941
        %v1009 = vpop.f32.mrb[0].mxu0
        %v1010 = vadd.f32 0.0, %v1009
        %v1011 = vpop.f32.mrb[0].mxu0
        %1012 = vdwg.mxu0
        %v1017 = vrot.slane %v850, 7
        %v1018 = vsel %vm583, %v1017, %v770
        %v1019 = vrot.slane %v930, 6
        %v1020 = vsel %vm585, %v1019, %v1018
        %v1021 = vrot.slane %v1010, 5
        %v1022 = vsel %vm587, %v1021, %v1020
        %vm1024 = vcmask 519168
        %1025 = vst.msk [vmem:[%s282] sm:$0xf] %vm1024, %v1022
        %s1026 = sand.u32 %s167, 1
        %s1027 = scalar_lea.sflag [#allocation4], %s1026
        %s1028 = sand.u32 %s167, 1
        %s1029 = smul.addr %s1028, 4
        %s1030 = scalar_lea.vmem [#allocation5], %s1029
        // Predicated region
        $region49: #{tpu_custom_call.1} parent=43 // pred_check
          %p1031 = pneg %p177
        $region50: #{tpu_custom_call.1} parent=43 // pred_check_branch
          %1033 = sbr.rel (%p1031) target = $region52
        $region51: #{tpu_custom_call.1} parent=43 // pred_region
          %s1035 = ssub.s32 64, 64
          %1036 = vsyncadd %s1027, %s1035
          %s1037 = smul.addr %s23, 64
          %s1038 = scalar_lea.hbm %s6, %s1037
          %s1040 = sshll.u32 %s1030, 4
          %s1041 = int_to_ptr.vmem [resolvable:$true] %s1040
          %1043 = dma.vmem_to_hbm [thread:$0]  %s1041, 64, %s1038, %s1027
        $region52: #{tpu_custom_call.1} parent=43 // pred_fallthru
          _
      $region44: #{tpu_custom_call.1} parent=5 // pred_fallthru
        _
      %p1044 = scmp.le.s32.totalorder 2, %s18
      // Predicated region
      $region53: #{tpu_custom_call.1} parent=5 // pred_check
        %p1045 = pneg %p1044
      $region54: #{tpu_custom_call.1} parent=5 // pred_check_branch
        %1047 = sbr.rel (%p1045) target = $region56
      $region55: #{tpu_custom_call.1} parent=5 // pred_region
        %s1048 = ssub.s32 %s18, 2
        // Predicated region
        $region57: #{tpu_custom_call.1} parent=55 // pred_check
          %p1049 = pneg %p183
        $region58: #{tpu_custom_call.1} parent=55 // pred_check_branch
          %1051 = sbr.rel (%p1049) target = $region60
        $region59: #{tpu_custom_call.1} parent=55 // pred_region
          %s1052 = sand.u32 %s168, 1
          %s1053 = scalar_lea.sflag [#allocation4], %s1052
          %s1054 = sand.u32 %s168, 1
          %s1055 = smul.addr %s1054, 4
          %s1056 = scalar_lea.vmem [#allocation5], %s1055
          %1057 = dma.done %s1053, 64
        $region60: #{tpu_custom_call.1} parent=55 // pred_fallthru
          _
      $region56: #{tpu_custom_call.1} parent=5 // pred_fallthru
        _
    $region6: #{tpu_custom_call.1} parent=1 // loop_footer
      %s22 = sadd.s32 1, %s18
    $region7: #{tpu_custom_call.1} parent=1 // loop_footer_branch
      %17 = sbr.rel target = $region3
    $region8: #{tpu_custom_call.1} parent=1 // loop_exit
      _
    %1058 = vsyncpa [#allocation3], 1
    %s1059 = scalar_lea.sflag [#allocation3], 1
    %1060 = vsyncpa %s1059, 1
    %1061 = vsyncpa [#allocation4], 1
    %s1062 = scalar_lea.sflag [#allocation4], 1
    %1063 = vsyncpa %s1062, 1

</llo_original>
